<compile_context>
chip_gen: v6e
topology: v6e:2x2x1
jax: 0.10.0
libtpu: 0.0.40
codegen_flags: <defaults>
</compile_context>

<pallas_src>
import math

import jax
import jax.numpy as jnp
from jax import lax
from jax.experimental import pallas as pl
from jax.experimental.pallas import tpu as pltpu

MU = 5000.0
_INV_LOG1P_MU = 1.0 / math.log(1.0 + MU)

LANES = 128
# Bytes streamed per grid step across BOTH inputs (one buffer set).
# 8 MiB/step -> 4 MiB per f32 input block -> 16 MiB double-buffered input VMEM.
_DEFAULT_STEP_BYTES = 8 * 1024 * 1024
_NCORES = 2            # leading "parallel" axis (v7x dual TC); trivial loop elsewhere


def _make_kernel(tile_rows, acc_rows, rows, spc, needs_mask):
    """Build the kernel specialized on the (static) tiling parameters."""
    folds = tile_rows // acc_rows

    def accum(out_ref, p, l):
        # 1/log(1+mu) scale hoisted to the wrapper (|a*s - b*s| == s*|a - b|).
        d = jnp.abs(jnp.log1p(MU * p) - jnp.log1p(MU * l))
        # Fold the tile into the lane-dense (acc_rows, 128) resident partial sum.
        out_ref[...] += jnp.sum(d.reshape(folds, acc_rows, LANES), axis=0)

    def kernel(p_ref, l_ref, out_ref):
        c = pl.program_id(0)   # core-split axis (parallel)
        j = pl.program_id(1)   # streaming / reduction axis (arbitrary)

        @pl.when(j == 0)
        def _():
            out_ref[...] = jnp.zeros_like(out_ref)

        if not needs_mask:
            # Exactly-tiled slab: no per-step scalar checks at all.
            accum(out_ref,
                  p_ref[...].astype(jnp.float32),
                  l_ref[...].astype(jnp.float32))
            return

        # Logical (un-clamped) first row of this block.
        row_base = (c * spc + j) * tile_rows

        @pl.when(row_base + tile_rows <= rows)
        def _():
            # Fully-valid block: unmasked fast path (steady state).
            accum(out_ref,
                  p_ref[...].astype(jnp.float32),
                  l_ref[...].astype(jnp.float32))

        @pl.when(jnp.logical_and(row_base < rows, row_base + tile_rows > rows))
        def _():
            # Single tail block per core: mask rows past the real array,
            # BEFORE the mu* multiply / log1p so OOB garbage cannot NaN.
            row_ids = row_base + lax.broadcasted_iota(
                jnp.int32, (tile_rows, LANES), 0)
            valid = row_ids < rows
            p = jnp.where(valid, p_ref[...].astype(jnp.float32), 0.0)
            l = jnp.where(valid, l_ref[...].astype(jnp.float32), 0.0)
            accum(out_ref, p, l)

        # row_base >= rows (clamp-repeat re-read of the last real block):
        # intentionally no branch -> contributes nothing, no double count.

    return kernel


def l1_mu_tonemap_loss(pred, label, *, step_bytes=_DEFAULT_STEP_BYTES):
    """Equivalent of Base.forward: nn.L1Loss()(mu_tonemap(pred), mu_tonemap(label))."""
    assert pred.shape == label.shape
    n = pred.size

    flat_p = pred.reshape(-1)
    flat_l = label.reshape(-1)

    # Rare fallback only: pad to a lane multiple (zero padding contributes 0).
    lane_pad = (-n) % LANES
    if lane_pad:
        flat_p = jnp.pad(flat_p, (0, lane_pad))
        flat_l = jnp.pad(flat_l, (0, lane_pad))

    rows = (n + lane_pad) // LANES
    p2 = flat_p.reshape(rows, LANES)
    l2 = flat_l.reshape(rows, LANES)

    # Dtype-scaled tile height: one grid step streams ~step_bytes over both
    # inputs; rounded to a multiple of 64 (legal for f32/bf16/f16, and lets the
    # resident accumulator be 64 rows tall).
    bytes_per_row = LANES * (p2.dtype.itemsize + l2.dtype.itemsize)
    cap_rows = max(64, (step_bytes // bytes_per_row) // 64 * 64)

    tile_rows = rows if rows <= cap_rows else cap_rows
    nb = -(-rows // tile_rows)                      # number of real row-blocks
    ncores = _NCORES if nb >= _NCORES else 1
    spc = -(-nb // ncores)                          # grid steps per core
    needs_mask = (ncores * spc * tile_rows) != rows
    if tile_rows % 64 == 0:
        acc_rows = 64
    elif tile_rows % 8 == 0:
        acc_rows = 8
    else:
        acc_rows = 1                                # only in the single-block case

    def in_map(c, j):
        # Clamp so logical blocks past the end (core-split remainder) re-read
        # the last real block; the kernel skips their accumulation entirely.
        return (jnp.minimum(c * spc + j, nb - 1), 0)

    partials = pl.pallas_call(
        _make_kernel(tile_rows, acc_rows, rows, spc, needs_mask),
        out_shape=jax.ShapeDtypeStruct((ncores * acc_rows, LANES), jnp.float32),
        grid=(ncores, spc),
        in_specs=[
            pl.BlockSpec((tile_rows, LANES), in_map),
            pl.BlockSpec((tile_rows, LANES), in_map),
        ],
        out_specs=pl.BlockSpec((acc_rows, LANES), lambda c, j: (c, 0)),
        compiler_params=pltpu.CompilerParams(
            dimension_semantics=("parallel", "arbitrary"),
            vmem_limit_bytes=32 * 1024 * 1024,
        ),
    )(p2, l2)

    # Final tiny reduce + hoisted tonemap scale + L1Loss(reduction='mean').
    return jnp.sum(partials) * jnp.float32(_INV_LOG1P_MU) / jnp.float32(n)


def _ref(p, l):
    tp = jnp.log1p(MU * p.astype(jnp.float32)) / math.log(1.0 + MU)
    tl = jnp.log1p(MU * l.astype(jnp.float32)) / math.log(1.0 + MU)
    return jnp.mean(jnp.abs(tp - tl))


# TODO(synk): `self._record['L1'] = result.item()` is host-side Python bookkeeping
# with no device-kernel equivalent; the returned scalar is the module's output.

if __name__ == "__main__":
    key = jax.random.PRNGKey(0)
    k1, k2 = jax.random.split(key)

    # 1) Small HDR-like (non-negative) NCHW inputs, default tiling (single block).
    pred = jax.random.uniform(k1, (2, 4, 16, 16), dtype=jnp.float32) * 2.0
    label = jax.random.uniform(k2, (2, 4, 16, 16), dtype=jnp.float32) * 2.0
    loss = jax.block_until_ready(l1_mu_tonemap_loss(pred, label))
    ref = jax.block_until_ready(_ref(pred, label))
    assert jnp.allclose(loss, ref, rtol=1e-5, atol=1e-6), (loss, ref)

    # 2) bf16 inputs; small step_bytes forces the multi-block grid, 2-way core
    #    split and the gated masked-tail path.
    k3, k4 = jax.random.split(k2)
    pred2 = (jax.random.uniform(k3, (2, 4, 200, 400), dtype=jnp.float32) * 2.0
             ).astype(jnp.bfloat16)
    label2 = (jax.random.uniform(k4, (2, 4, 200, 400), dtype=jnp.float32) * 2.0
              ).astype(jnp.bfloat16)
    loss2 = jax.block_until_ready(
        l1_mu_tonemap_loss(pred2, label2, step_bytes=64 * 1024))
    ref2 = jax.block_until_ready(_ref(pred2, label2))
    assert jnp.allclose(loss2, ref2, rtol=1e-5, atol=1e-6), (loss2, ref2)

    # 2b) Same bf16 inputs with the default (large-tile) configuration.
    loss2b = jax.block_until_ready(l1_mu_tonemap_loss(pred2, label2))
    assert jnp.allclose(loss2b, ref2, rtol=1e-5, atol=1e-6), (loss2b, ref2)

    # 3) Ragged element count (numel % 128 != 0) exercises the lane-pad fallback.
    k5, k6 = jax.random.split(k4)
    pred3 = jax.random.uniform(k5, (3, 5, 7, 11), dtype=jnp.float32) * 2.0
    label3 = jax.random.uniform(k6, (3, 5, 7, 11), dtype=jnp.float32) * 2.0
    loss3 = jax.block_until_ready(l1_mu_tonemap_loss(pred3, label3))
    ref3 = jax.block_until_ready(_ref(pred3, label3))
    assert jnp.allclose(loss3, ref3, rtol=1e-5, atol=1e-6), (loss3, ref3)

    print("KERNEL_OK")
</pallas_src>

<mosaic_0001>
module attributes {stable_mosaic.version = 11 : i64} {
  func.func @kernel(%arg0: i32, %arg1: i32, %arg2: memref<16x128xf32, #tpu.memory_space<vmem>>, %arg3: memref<16x128xf32, #tpu.memory_space<vmem>>, %arg4: memref<8x128xf32, #tpu.memory_space<vmem>>) attributes {dimension_semantics = [#tpu.dimension_semantics<parallel>, #tpu.dimension_semantics<arbitrary>], iteration_bounds = array<i64: 1, 1>, scalar_prefetch = 0 : i64, scratch_operands = 0 : i64, tpu.core_type = #tpu.core_type<tc>, window_params = [{transform_indices = @transform_0, window_bounds = array<i64: 16, 128>}, {transform_indices = @transform_1, window_bounds = array<i64: 16, 128>}, {transform_indices = @transform_2, window_bounds = array<i64: 8, 128>}]} {
    %c0_i32 = arith.constant 0 : i32
    %0 = arith.cmpi eq, %arg1, %c0_i32 : i32
    %1 = arith.extui %0 : i1 to i32
    %c0_i32_0 = arith.constant 0 : i32
    %2 = arith.cmpi ne, %1, %c0_i32_0 : i32
    scf.if %2 {
      %cst_10 = arith.constant 0.000000e+00 : f32
      %18 = vector.broadcast %cst_10 : f32 to vector<8x128xf32>
      %c0_11 = arith.constant 0 : index
      %c0_12 = arith.constant 0 : index
      %19 = vector.load %arg4[%c0_11, %c0_12] : memref<8x128xf32, #tpu.memory_space<vmem>>, vector<8x128xf32>
      tpu.vector_store %arg4[%c0_11, %c0_12], %18 {strides = array<i32>} : memref<8x128xf32, #tpu.memory_space<vmem>>, vector<8x128xf32>,
    } else {
    }
    %c0 = arith.constant 0 : index
    %c0_1 = arith.constant 0 : index
    %3 = vector.load %arg2[%c0, %c0_1] : memref<16x128xf32, #tpu.memory_space<vmem>>, vector<16x128xf32>
    %c0_2 = arith.constant 0 : index
    %c0_3 = arith.constant 0 : index
    %4 = vector.load %arg3[%c0_2, %c0_3] : memref<16x128xf32, #tpu.memory_space<vmem>>, vector<16x128xf32>
    %cst = arith.constant 5.000000e+03 : f32
    %5 = vector.broadcast %cst : f32 to vector<16x128xf32>
    %6 = arith.mulf %5, %3 : vector<16x128xf32>
    %7 = math.log1p %6 : vector<16x128xf32>
    %cst_4 = arith.constant 5.000000e+03 : f32
    %8 = vector.broadcast %cst_4 : f32 to vector<16x128xf32>
    %9 = arith.mulf %8, %4 : vector<16x128xf32>
    %10 = math.log1p %9 : vector<16x128xf32>
    %11 = arith.subf %7, %10 : vector<16x128xf32>
    %12 = math.absf %11 : vector<16x128xf32>
    %c0_5 = arith.constant 0 : index
    %c0_6 = arith.constant 0 : index
    %13 = vector.load %arg4[%c0_5, %c0_6] : memref<8x128xf32, #tpu.memory_space<vmem>>, vector<8x128xf32>
    %14 = vector.shape_cast %12 : vector<16x128xf32> to vector<2x8x128xf32>
    %cst_7 = arith.constant dense<0.000000e+00> : vector<8x128xf32>
    %15 = vector.multi_reduction <add>, %14, %cst_7 [0] : vector<2x8x128xf32> to vector<8x128xf32>
    %16 = arith.addf %13, %15 : vector<8x128xf32>
    %c0_8 = arith.constant 0 : index
    %c0_9 = arith.constant 0 : index
    %17 = vector.load %arg4[%c0_8, %c0_9] : memref<8x128xf32, #tpu.memory_space<vmem>>, vector<8x128xf32>
    tpu.vector_store %arg4[%c0_8, %c0_9], %16 {strides = array<i32>} : memref<8x128xf32, #tpu.memory_space<vmem>>, vector<8x128xf32>,
    return
  }
  func.func @transform_0(%arg0: i32, %arg1: i32) -> (i32, i32) {
    %c1_i32 = arith.constant 1 : i32
    %0 = arith.muli %arg0, %c1_i32 : i32
    %1 = arith.addi %0, %arg1 : i32
    %c0_i32 = arith.constant 0 : i32
    %2 = arith.minsi %1, %c0_i32 : i32
    %c0_i32_0 = arith.constant 0 : i32
    %c0_i32_1 = arith.constant 0 : i32
    return %2, %c0_i32_0 : i32, i32
  }
  func.func @transform_1(%arg0: i32, %arg1: i32) -> (i32, i32) {
    %c1_i32 = arith.constant 1 : i32
    %0 = arith.muli %arg0, %c1_i32 : i32
    %1 = arith.addi %0, %arg1 : i32
    %c0_i32 = arith.constant 0 : i32
    %2 = arith.minsi %1, %c0_i32 : i32
    %c0_i32_0 = arith.constant 0 : i32
    %c0_i32_1 = arith.constant 0 : i32
    return %2, %c0_i32_0 : i32, i32
  }
  func.func @transform_2(%arg0: i32, %arg1: i32) -> (i32, i32) {
    %c0_i32 = arith.constant 0 : i32
    %c0_i32_0 = arith.constant 0 : i32
    return %arg0, %c0_i32 : i32, i32
  }
}

</mosaic_0001>

<llo_original>
// kernel: tpu_custom_call.1
$region0: #{tpu_custom_call.1}
  #allocation0 [shape = 'u32[]', space=smem, size = 0x4, offset = 0x4, fixed_abs, tag = 'smem constant byte address 0x4 - core index']
  #allocation1 [shape = 'u32[144,128]{1,0:T(1,128)}', space=vmem, size = 0x12000, scoped, tag = 'internal scratch']
  %s0 = inlined_call_operand.hbm [shape: f32[16,128], index: 0, kind: input, shape index: {}]
  %s1 = inlined_call_operand.hbm [shape: f32[16,128], index: 1, kind: input, shape index: {}]
  %s2 = inlined_call_operand.hbm [shape: f32[8,128], index: 2, kind: output, shape index: {}]
  %s3 = sld [smem:[#allocation0]]
  $region30: #{tpu_custom_call.1} parent=0
    _
  %s5 = ssub.s32 1, %s3
  %s6 = scalar_select 0, %s5, %s3
  $region1: #{tpu_custom_call.1} parent=0
    #allocation2 [shape = 'u8[8192]{0}', space=vmem, size = 0x2000, scoped, tag = 'input window, operand 0, single buffered']
    #allocation3 [shape = 's32[1]{0}', space=sflag, size = 0x4, scoped, tag = 'scoped memory for tpu_custom_call.1']
    #allocation4 [shape = 's32[1]{0}', space=sflag, size = 0x4, scoped, tag = 'scoped memory for tpu_custom_call.1']
    #allocation5 [shape = 'u8[8192]{0}', space=vmem, size = 0x2000, scoped, tag = 'input window, operand 1, single buffered']
    #allocation6 [shape = 's32[1]{0}', space=sflag, size = 0x4, scoped, tag = 'scoped memory for tpu_custom_call.1']
    #allocation7 [shape = 'u8[4096]{0}', space=vmem, size = 0x1000, scoped, tag = 'output window, operand 0, single buffered']
    %7 = vsyncpa [#allocation3], 0
    %8 = vsyncpa [#allocation6], 0
    %9 = vsyncpa [#allocation4], 0
    // Predicated region
    $region2: #{tpu_custom_call.1} parent=1 // pred_check
      _
    $region3: #{tpu_custom_call.1} parent=1 // pred_check_branch
      %11 = sbr.rel (0) target = $region5
    $region4: #{tpu_custom_call.1} parent=1 // pred_region
      %s12 = sadd.s32 0, 0
      %p13 = scmp.lt.s32.totalorder %s12, 0
      %s14 = scalar_select %p13, %s12, 0
      %s15 = smul.u32 2, %s14
      %s17 = ssub.s32 256, 256
      %18 = vsyncadd [#allocation3], %s17
      %s19 = smul.addr %s15, 128
      %s20 = scalar_lea.hbm %s0, %s19
      %s21 = sshll.u32 [#allocation2], 4
      %s22 = int_to_ptr.vmem [resolvable:$true] %s21
      %27 = dma.hbm_to_vmem [thread:$0]  %s20, 256, %s22, [#allocation3], 128, 128, 8
    $region5: #{tpu_custom_call.1} parent=1 // pred_fallthru
      _
    // Predicated region
    $region6: #{tpu_custom_call.1} parent=1 // pred_check
      _
    $region7: #{tpu_custom_call.1} parent=1 // pred_check_branch
      %29 = sbr.rel (0) target = $region9
    $region8: #{tpu_custom_call.1} parent=1 // pred_region
      %s30 = sadd.s32 0, 0
      %p31 = scmp.lt.s32.totalorder %s30, 0
      %s32 = scalar_select %p31, %s30, 0
      %s33 = smul.u32 2, %s32
      %s35 = ssub.s32 256, 256
      %36 = vsyncadd [#allocation6], %s35
      %s37 = smul.addr %s33, 128
      %s38 = scalar_lea.hbm %s1, %s37
      %s39 = sshll.u32 [#allocation5], 4
      %s40 = int_to_ptr.vmem [resolvable:$true] %s39
      %45 = dma.hbm_to_vmem [thread:$0]  %s38, 256, %s40, [#allocation6], 128, 128, 8
    $region9: #{tpu_custom_call.1} parent=1 // pred_fallthru
      _
    // Predicated region
    $region10: #{tpu_custom_call.1} parent=1 // pred_check
      _
    $region11: #{tpu_custom_call.1} parent=1 // pred_check_branch
      %47 = sbr.rel (0) target = $region13
    $region12: #{tpu_custom_call.1} parent=1 // pred_region
      %48 = dma.done [#allocation3], 256
    $region13: #{tpu_custom_call.1} parent=1 // pred_fallthru
      _
    // Predicated region
    $region14: #{tpu_custom_call.1} parent=1 // pred_check
      _
    $region15: #{tpu_custom_call.1} parent=1 // pred_check_branch
      %50 = sbr.rel (0) target = $region17
    $region16: #{tpu_custom_call.1} parent=1 // pred_region
      %51 = dma.done [#allocation6], 256
    $region17: #{tpu_custom_call.1} parent=1 // pred_fallthru
      _
    %s52 = sadd.s32 0, 0
    %p53 = scmp.lt.s32.totalorder %s52, 0
    %s54 = scalar_select %p53, %s52, 0
    %s55 = smul.u32 2, %s54
    %s56 = sadd.s32 0, 0
    %p57 = scmp.lt.s32.totalorder %s56, 0
    %s58 = scalar_select %p57, %s56, 0
    %s59 = smul.u32 2, %s58
    %p60 = scmp.eq.s32.totalorder 0, 0
    // Predicated region
    $region18: #{tpu_custom_call.1} parent=1 // pred_check
      %p61 = pneg %p60
    $region19: #{tpu_custom_call.1} parent=1 // pred_check_branch
      %63 = sbr.rel (%p61) target = $region21
    $region20: #{tpu_custom_call.1} parent=1 // pred_region
      %64 = vst [vmem:[#allocation7] sm:$0xff] 0.0
    $region21: #{tpu_custom_call.1} parent=1 // pred_fallthru
      _
    %v65 = vld [vmem:[#allocation2] sm:$0xff]
    %v66 = vld [vmem:[#allocation2 + $0x8] sm:$0xff]
    %v67 = vld [vmem:[#allocation5] sm:$0xff]
    %v68 = vld [vmem:[#allocation5 + $0x8] sm:$0xff]
    %v69 = vmul.f32 %v65, 5000.0
    %v70 = vmul.f32 %v66, 5000.0
    %v71 = vadd.f32 %v69, 1.0
    %v72 = vlog2.pop %v71
    %v73 = vmul.f32 %v72, 0.6931472
    %v74 = vmul.f32 -0.5, %v69
    %v75 = vadd.f32 %v74, 1.0
    %v76 = vmul.f32 %v75, %v69
    %v77 = vand.u32 2147483647, %v69
    %vm78 = vcmp.lt.f32.partialorder %v77, 0.0004427343
    %v79 = vsel %vm78, %v76, %v73
    %v80 = vadd.f32 %v70, 1.0
    %v81 = vlog2.pop %v80
    %v82 = vmul.f32 %v81, 0.6931472
    %v83 = vmul.f32 -0.5, %v70
    %v84 = vadd.f32 %v83, 1.0
    %v85 = vmul.f32 %v84, %v70
    %v86 = vand.u32 2147483647, %v70
    %vm87 = vcmp.lt.f32.partialorder %v86, 0.0004427343
    %v88 = vsel %vm87, %v85, %v82
    %v89 = vmul.f32 %v67, 5000.0
    %v90 = vmul.f32 %v68, 5000.0
    %v91 = vadd.f32 %v89, 1.0
    %v92 = vlog2.pop %v91
    %v93 = vmul.f32 %v92, 0.6931472
    %v94 = vmul.f32 -0.5, %v89
    %v95 = vadd.f32 %v94, 1.0
    %v96 = vmul.f32 %v95, %v89
    %v97 = vand.u32 2147483647, %v89
    %vm98 = vcmp.lt.f32.partialorder %v97, 0.0004427343
    %v99 = vsel %vm98, %v96, %v93
    %v100 = vadd.f32 %v90, 1.0
    %v101 = vlog2.pop %v100
    %v102 = vmul.f32 %v101, 0.6931472
    %v103 = vmul.f32 -0.5, %v90
    %v104 = vadd.f32 %v103, 1.0
    %v105 = vmul.f32 %v104, %v90
    %v106 = vand.u32 2147483647, %v90
    %vm107 = vcmp.lt.f32.partialorder %v106, 0.0004427343
    %v108 = vsel %vm107, %v105, %v102
    %v109 = vsub.f32 %v79, %v99
    %v110 = vsub.f32 %v88, %v108
    %v111 = vand.u32 2147483647, %v109
    %v112 = vand.u32 2147483647, %v110
    %v113 = vld [vmem:[#allocation7] sm:$0xff]
    %v114 = vadd.f32 %v111, %v112
    %v115 = vadd.f32 %v113, %v114
    %116 = vst [vmem:[#allocation7] sm:$0xff] %v115
    // Predicated region
    $region22: #{tpu_custom_call.1} parent=1 // pred_check
      _
    $region23: #{tpu_custom_call.1} parent=1 // pred_check_branch
      %118 = sbr.rel (0) target = $region25
    $region24: #{tpu_custom_call.1} parent=1 // pred_region
      %s120 = ssub.s32 128, 128
      %121 = vsyncadd [#allocation4], %s120
      %s123 = sshll.u32 [#allocation7], 4
      %s124 = int_to_ptr.vmem [resolvable:$true] %s123
      %126 = dma.vmem_to_hbm [thread:$0]  %s124, 128, %s2, [#allocation4]
    $region25: #{tpu_custom_call.1} parent=1 // pred_fallthru
      _
    // Predicated region
    $region26: #{tpu_custom_call.1} parent=1 // pred_check
      _
    $region27: #{tpu_custom_call.1} parent=1 // pred_check_branch
      %128 = sbr.rel (0) target = $region29
    $region28: #{tpu_custom_call.1} parent=1 // pred_region
      %129 = dma.done [#allocation4], 128
    $region29: #{tpu_custom_call.1} parent=1 // pred_fallthru
      _
    %130 = vsyncpa [#allocation3], 1
    %131 = vsyncpa [#allocation6], 1
    %132 = vsyncpa [#allocation4], 1

</llo_original>
